<compile_context>
chip_gen: v7x
topology: tpu7x:2x2x1
jax: 0.10.0
libtpu: 0.0.40
codegen_flags: <defaults>
</compile_context>

<pallas_src>
import functools

import jax
import jax.numpy as jnp
from jax.experimental import pallas as pl
from jax.experimental.pallas import tpu as pltpu

LN_EPS = 1e-5


def _patch_merge_kernel(xe_ref, xo_ref, w0_ref, w1_ref, gb_ref, o_ref):
    # xe_ref/xo_ref : (tr, 1, W/2, 2C) h-even / h-odd row-pair tiles; the parity
    #                 was selected by the input DMA (block size 1 on axis 1), so
    #                 [:, 0] below is a free squeeze of a size-1 major axis.
    # w0_ref/w1_ref : (2C, 2C) reduction weights per h-parity; rows [0:C]
    #                 multiply even-w channels, rows [C:2C] odd-w channels.
    # gb_ref        : (2, 2C)  row 0 = LayerNorm gamma, row 1 = beta (f32).
    # o_ref         : (tm, 2C) tm = tr * W/2 output rows (lane-dense, 2C >= 128).
    tr = xe_ref.shape[0]
    wh = xe_ref.shape[2]
    k2 = xe_ref.shape[3]
    tm = tr * wh
    cdt = w0_ref.dtype  # matmul operand dtype (f32 or bf16)

    # Merge (tr, W/2) -> tm while still in the input dtype (layout-preserving
    # when W/2 % 8 == 0), then cast operands for the MXU; accumulation is f32.
    # TODO(synk): for Swin stages with W/2 = 7 or 14 this merge needs a VMEM
    # relayout; a rank-3 dot_general (contracting the last dim) would avoid it.
    xe = xe_ref[:, 0, :, :].reshape(tm, k2).astype(cdt)
    xo = xo_ref[:, 0, :, :].reshape(tm, k2).astype(cdt)

    y = jnp.dot(xe, w0_ref[...], preferred_element_type=jnp.float32)
    y = y + jnp.dot(xo, w1_ref[...], preferred_element_type=jnp.float32)

    # LayerNorm over the last dim: single-pass f32 statistics, clamped variance.
    n = y.shape[-1]
    inv_n = 1.0 / n
    mean = jnp.sum(y, axis=-1, keepdims=True) * inv_n
    mean_sq = jnp.sum(y * y, axis=-1, keepdims=True) * inv_n
    var = jnp.maximum(mean_sq - mean * mean, 0.0)
    y_hat = (y - mean) * jax.lax.rsqrt(var + LN_EPS)

    gb = gb_ref[...]
    o_ref[...] = (y_hat * gb[0:1, :] + gb[1:2, :]).astype(o_ref.dtype)


def _vmem_capacity_bytes():
    """Queried VMEM capacity; conservative 64 MiB (v7x per-core) fallback."""
    try:
        cap = getattr(pltpu.get_tpu_info(), "vmem_capacity_bytes", None)
        if cap is not None:
            return int(cap)
    except Exception:
        pass
    return 64 * 1024 * 1024


def _pick_tr(rp_total, w_half, target_rows):
    """Row-pair tile size: largest divisor of rp_total whose output tile
    tm = tr * w_half is sublane-aligned (or full-extent), fits target_rows,
    and (when possible) leaves >= 2 grid steps for the two v7x TensorCores."""
    divisors = [d for d in range(1, rp_total + 1) if rp_total % d == 0]
    aligned = [d for d in divisors if (d * w_half) % 8 == 0 or d == rp_total]
    multi = [d for d in aligned
             if d * w_half <= target_rows and (rp_total // d >= 2 or rp_total == 1)]
    if multi:
        return max(multi)
    fitting = [d for d in aligned if d * w_half <= target_rows]
    if fitting:
        return max(fitting)
    return min(aligned)


def _vmem_footprint(tr, w_half, k2, n, x_isz, w_isz, o_isz):
    tm = tr * w_half
    xb = 2 * 2 * tr * w_half * k2 * x_isz   # two parity operands, double-buffered
    ob = 2 * tm * n * o_isz                 # output, double-buffered
    wb = 2 * 2 * k2 * n * w_isz             # w0 + w1, double-buffered
    gbb = 2 * 2 * n * 4                     # gamma/beta
    return xb + ob + wb + gbb


def patch_merging_forward(x, w_red_t, gamma, beta, H, W, *,
                          target_tile_rows=1024, compute_dtype=None):
    """x: [B, L, C]; w_red_t: [4C, 2C] (nn.Linear weight transposed);
    gamma/beta: [2C].  Returns [B, L/4, 2C].

    compute_dtype: optional matmul-operand dtype (e.g. jnp.bfloat16).  Weights
    are cast once at trace time; x is cast inside the kernel (no extra HBM pass
    over x).  Accumulation and LayerNorm stay in float32.
    """
    B, L, C = x.shape
    assert L == H * W, "Input feature has wrong size for patch merging"
    assert H % 2 == 0 and W % 2 == 0, "H and W must be even"
    h_half, w_half = H // 2, W // 2
    K2 = 2 * C
    N = 2 * C
    assert w_red_t.shape == (4 * C, N)

    rp_total = B * h_half          # total row-pairs (batch folded into the grid)
    rows = rp_total * w_half       # total output rows

    # Free, contiguous reshape: [B, L, C] -> [B*H/2, 2, W/2, 2C].
    # Along the last dim: [0:C] = even-w channels, [C:2C] = odd-w channels.
    x_view = x.reshape(rp_total, 2, w_half, K2)

    # Split the reduction weight by (h-parity, w-parity) once at trace time.
    # Row blocks of w_red_t follow the PyTorch concat order
    # x0=(0,0), x1=(1,0), x2=(0,1), x3=(1,1)  (h-offset, w-offset).
    w4 = w_red_t.reshape(4, C, N)
    w0 = jnp.concatenate([w4[0], w4[2]], axis=0)   # h-even: [even-w ; odd-w]
    w1 = jnp.concatenate([w4[1], w4[3]], axis=0)   # h-odd : [even-w ; odd-w]
    gb = jnp.stack([gamma, beta], axis=0).astype(jnp.float32)   # (2, N)

    if compute_dtype is not None:
        w0 = w0.astype(compute_dtype)
        w1 = w1.astype(compute_dtype)

    x_isz = x.dtype.itemsize
    w_isz = w0.dtype.itemsize
    o_isz = x.dtype.itemsize

    budget = int(0.75 * _vmem_capacity_bytes())
    target = int(target_tile_rows)
    tr = _pick_tr(rp_total, w_half, target)
    for _ in range(8):   # shrink the tile if the footprint would blow the budget
        if _vmem_footprint(tr, w_half, K2, N, x_isz, w_isz, o_isz) <= budget or tr == 1:
            break
        target = max(w_half, target // 2)
        new_tr = _pick_tr(rp_total, w_half, target)
        if new_tr == tr:
            break
        tr = new_tr
    tm = tr * w_half
    n_steps = rp_total // tr
    footprint = _vmem_footprint(tr, w_half, K2, N, x_isz, w_isz, o_isz)
    vmem_limit = min(budget, max(footprint + (4 << 20), 32 << 20))

    # TODO(synk): single-buffer the constant-index w0/w1/gb blocks
    # (pipeline_mode=pl.Buffered(1)) to halve their VMEM footprint on v7x once
    # that path is verified for pallas_call in_specs.

    out_flat = pl.pallas_call(
        _patch_merge_kernel,
        out_shape=jax.ShapeDtypeStruct((rows, N), x.dtype),
        grid_spec=pltpu.PrefetchScalarGridSpec(
            num_scalar_prefetch=0,
            grid=(n_steps,),
            in_specs=[
                # h-even / h-odd row-pair tiles: parity selected by the input
                # DMA (block size 1 on axis 1) -> contiguous (tr, W/2, 2C) data.
                pl.BlockSpec((tr, 1, w_half, K2), lambda t: (t, 0, 0, 0)),
                pl.BlockSpec((tr, 1, w_half, K2), lambda t: (t, 1, 0, 0)),
                # Weights / LN params: constant index map -> DMA'd once.
                pl.BlockSpec((K2, N), lambda t: (0, 0)),
                pl.BlockSpec((K2, N), lambda t: (0, 0)),
                pl.BlockSpec((2, N), lambda t: (0, 0)),
            ],
            out_specs=pl.BlockSpec((tm, N), lambda t: (t, 0)),
        ),
        compiler_params=pltpu.CompilerParams(
            dimension_semantics=("parallel",),
            vmem_limit_bytes=int(vmem_limit),
        ),
    )(x_view, x_view, w0, w1, gb)

    return out_flat.reshape(B, (H // 2) * (W // 2), N)


def patch_merging_reference(x, w_red_t, gamma, beta, H, W):
    """Pure-JAX reference mirroring the PyTorch module semantics."""
    B, L, C = x.shape
    x_bhwc = x.reshape(B, H, W, C)
    x0 = x_bhwc[:, 0::2, 0::2, :]
    x1 = x_bhwc[:, 1::2, 0::2, :]
    x2 = x_bhwc[:, 0::2, 1::2, :]
    x3 = x_bhwc[:, 1::2, 1::2, :]
    x_cat = jnp.concatenate([x0, x1, x2, x3], axis=-1).reshape(B, -1, 4 * C)
    y = jnp.einsum("blk,kn->bln", x_cat, w_red_t)
    mean = jnp.mean(y, axis=-1, keepdims=True)
    var = jnp.mean((y - mean) ** 2, axis=-1, keepdims=True)
    y_hat = (y - mean) * jax.lax.rsqrt(var + LN_EPS)
    return y_hat * gamma + beta


if __name__ == "__main__":
    # Module-consistent small shapes: input_resolution=(16,16), dim=64, batch=2.
    B, H, W, dim = 2, 16, 16, 64
    L = H * W

    key = jax.random.PRNGKey(0)
    kx, kw, kg, kb = jax.random.split(key, 4)

    x = jax.random.normal(kx, (B, L, dim), dtype=jnp.float32)

    # nn.Linear(4*dim, 2*dim, bias=False): weight (2*dim, 4*dim); kernel uses W^T.
    bound = 1.0 / (4 * dim) ** 0.5
    w_red = jax.random.uniform(
        kw, (2 * dim, 4 * dim), minval=-bound, maxval=bound, dtype=jnp.float32)
    w_red_t = w_red.T  # (4*dim, 2*dim)

    # LayerNorm(2*dim) affine params (non-trivial to exercise the affine path).
    gamma = 1.0 + 0.1 * jax.random.normal(kg, (2 * dim,), dtype=jnp.float32)
    beta = 0.1 * jax.random.normal(kb, (2 * dim,), dtype=jnp.float32)

    ref = jax.block_until_ready(
        patch_merging_reference(x, w_red_t, gamma, beta, H, W))

    # f32 matmul-operand path (tight tolerance).
    fwd_f32 = jax.jit(patch_merging_forward, static_argnums=(4, 5))
    out = jax.block_until_ready(fwd_f32(x, w_red_t, gamma, beta, H, W))
    assert out.shape == (B, L // 4, 2 * dim), out.shape
    err = float(jnp.max(jnp.abs(out - ref)))
    assert jnp.allclose(out, ref, atol=1e-4, rtol=1e-4), f"f32 mismatch, max_err={err}"

    # bf16 matmul-operand path (MXU fast path); quantization error -> looser tol.
    fwd_bf16 = jax.jit(
        functools.partial(patch_merging_forward, compute_dtype=jnp.bfloat16),
        static_argnums=(4, 5))
    out_bf16 = jax.block_until_ready(fwd_bf16(x, w_red_t, gamma, beta, H, W))
    err_bf16 = float(jnp.max(jnp.abs(out_bf16 - ref)))
    assert jnp.allclose(out_bf16, ref, atol=5e-2, rtol=5e-2), (
        f"bf16 mismatch, max_err={err_bf16}")

    print("KERNEL_OK")
</pallas_src>

<mosaic_0001>
module attributes {stable_mosaic.version = 11 : i64} {
  func.func @_patch_merge_kernel(%arg0: i32, %arg1: memref<8x1x8x128xf32, #tpu.memory_space<vmem>>, %arg2: memref<8x1x8x128xf32, #tpu.memory_space<vmem>>, %arg3: memref<128x128xf32, #tpu.memory_space<vmem>>, %arg4: memref<128x128xf32, #tpu.memory_space<vmem>>, %arg5: memref<2x128xf32, #tpu.memory_space<vmem>>, %arg6: memref<64x128xf32, #tpu.memory_space<vmem>>) attributes {dimension_semantics = [#tpu.dimension_semantics<parallel>], iteration_bounds = array<i64: 2>, scalar_prefetch = 0 : i64, scratch_operands = 0 : i64, tpu.core_type = #tpu.core_type<tc>, window_params = [{transform_indices = @transform_0, window_bounds = array<i64: 8, 1, 8, 128>}, {transform_indices = @transform_1, window_bounds = array<i64: 8, 1, 8, 128>}, {pipeline_mode = #tpu.pipeline_mode<synchronous>, transform_indices = @transform_2, window_bounds = array<i64: 128, 128>}, {pipeline_mode = #tpu.pipeline_mode<synchronous>, transform_indices = @transform_3, window_bounds = array<i64: 128, 128>}, {pipeline_mode = #tpu.pipeline_mode<synchronous>, transform_indices = @transform_4, window_bounds = array<i64: 2, 128>}, {transform_indices = @transform_5, window_bounds = array<i64: 64, 128>}]} {
    %c0 = arith.constant 0 : index
    %c0_0 = arith.constant 0 : index
    %c0_1 = arith.constant 0 : index
    %c0_2 = arith.constant 0 : index
    %0 = vector.load %arg1[%c0, %c0_0, %c0_1, %c0_2] : memref<8x1x8x128xf32, #tpu.memory_space<vmem>>, vector<8x1x8x128xf32>
    %1 = vector.shape_cast %0 : vector<8x1x8x128xf32> to vector<8x8x128xf32>
    %2 = vector.shape_cast %1 : vector<8x8x128xf32> to vector<64x128xf32>
    %c0_3 = arith.constant 0 : index
    %c0_4 = arith.constant 0 : index
    %c0_5 = arith.constant 0 : index
    %c0_6 = arith.constant 0 : index
    %3 = vector.load %arg2[%c0_3, %c0_4, %c0_5, %c0_6] : memref<8x1x8x128xf32, #tpu.memory_space<vmem>>, vector<8x1x8x128xf32>
    %4 = vector.shape_cast %3 : vector<8x1x8x128xf32> to vector<8x8x128xf32>
    %5 = vector.shape_cast %4 : vector<8x8x128xf32> to vector<64x128xf32>
    %c0_7 = arith.constant 0 : index
    %c0_8 = arith.constant 0 : index
    %6 = vector.load %arg3[%c0_7, %c0_8] : memref<128x128xf32, #tpu.memory_space<vmem>>, vector<128x128xf32>
    %cst = arith.constant dense<0.000000e+00> : vector<64x128xf32>
    %7 = tpu.matmul %2, %6, %cst {dimension_numbers = #tpu.dot_dimension_numbers<[1], [0], [0], [1], [0, 0, 1, 1], [], []>} : vector<64x128xf32>, vector<128x128xf32>, vector<64x128xf32> -> vector<64x128xf32>
    %c0_9 = arith.constant 0 : index
    %c0_10 = arith.constant 0 : index
    %8 = vector.load %arg4[%c0_9, %c0_10] : memref<128x128xf32, #tpu.memory_space<vmem>>, vector<128x128xf32>
    %cst_11 = arith.constant dense<0.000000e+00> : vector<64x128xf32>
    %9 = tpu.matmul %5, %8, %cst_11 {dimension_numbers = #tpu.dot_dimension_numbers<[1], [0], [0], [1], [0, 0, 1, 1], [], []>} : vector<64x128xf32>, vector<128x128xf32>, vector<64x128xf32> -> vector<64x128xf32>
    %10 = arith.addf %7, %9 : vector<64x128xf32>
    %cst_12 = arith.constant dense<0.000000e+00> : vector<64xf32>
    %11 = vector.multi_reduction <add>, %10, %cst_12 [1] : vector<64x128xf32> to vector<64xf32>
    %12 = vector.shape_cast %11 : vector<64xf32> to vector<64x1xf32>
    %cst_13 = arith.constant 7.812500e-03 : f32
    %13 = vector.broadcast %cst_13 : f32 to vector<64x1xf32>
    %14 = arith.mulf %12, %13 : vector<64x1xf32>
    %15 = arith.mulf %10, %10 : vector<64x128xf32>
    %cst_14 = arith.constant dense<0.000000e+00> : vector<64xf32>
    %16 = vector.multi_reduction <add>, %15, %cst_14 [1] : vector<64x128xf32> to vector<64xf32>
    %17 = vector.shape_cast %16 : vector<64xf32> to vector<64x1xf32>
    %cst_15 = arith.constant 7.812500e-03 : f32
    %18 = vector.broadcast %cst_15 : f32 to vector<64x1xf32>
    %19 = arith.mulf %17, %18 : vector<64x1xf32>
    %20 = arith.mulf %14, %14 : vector<64x1xf32>
    %21 = arith.subf %19, %20 : vector<64x1xf32>
    %cst_16 = arith.constant 0.000000e+00 : f32
    %22 = vector.broadcast %cst_16 : f32 to vector<64x1xf32>
    %23 = arith.maximumf %21, %22 : vector<64x1xf32>
    %24 = vector.broadcast %14 : vector<64x1xf32> to vector<64x128xf32>
    %25 = arith.subf %10, %24 : vector<64x128xf32>
    %cst_17 = arith.constant 9.99999974E-6 : f32
    %26 = vector.broadcast %cst_17 : f32 to vector<64x1xf32>
    %27 = arith.addf %23, %26 : vector<64x1xf32>
    %28 = math.rsqrt %27 : vector<64x1xf32>
    %29 = vector.broadcast %28 : vector<64x1xf32> to vector<64x128xf32>
    %30 = arith.mulf %25, %29 : vector<64x128xf32>
    %c0_18 = arith.constant 0 : index
    %c0_19 = arith.constant 0 : index
    %31 = vector.load %arg5[%c0_18, %c0_19] : memref<2x128xf32, #tpu.memory_space<vmem>>, vector<2x128xf32>
    %32 = vector.extract_strided_slice %31 {offsets = [0, 0], sizes = [1, 128], strides = [1, 1]} : vector<2x128xf32> to vector<1x128xf32>
    %33 = vector.broadcast %32 : vector<1x128xf32> to vector<64x128xf32>
    %34 = arith.mulf %30, %33 : vector<64x128xf32>
    %35 = vector.extract_strided_slice %31 {offsets = [1, 0], sizes = [1, 128], strides = [1, 1]} : vector<2x128xf32> to vector<1x128xf32>
    %36 = vector.broadcast %35 : vector<1x128xf32> to vector<64x128xf32>
    %37 = arith.addf %34, %36 : vector<64x128xf32>
    %c0_20 = arith.constant 0 : index
    %c0_21 = arith.constant 0 : index
    %38 = vector.load %arg6[%c0_20, %c0_21] : memref<64x128xf32, #tpu.memory_space<vmem>>, vector<64x128xf32>
    tpu.vector_store %arg6[%c0_20, %c0_21], %37 {strides = array<i32>} : memref<64x128xf32, #tpu.memory_space<vmem>>, vector<64x128xf32>,
    return
  }
  func.func @transform_0(%arg0: i32) -> (i32, i32, i32, i32) {
    %c0_i32 = arith.constant 0 : i32
    %c0_i32_0 = arith.constant 0 : i32
    %c0_i32_1 = arith.constant 0 : i32
    %c0_i32_2 = arith.constant 0 : i32
    return %arg0, %c0_i32, %c0_i32_0, %c0_i32_1 : i32, i32, i32, i32
  }
  func.func @transform_1(%arg0: i32) -> (i32, i32, i32, i32) {
    %c1_i32 = arith.constant 1 : i32
    %c0_i32 = arith.constant 0 : i32
    %c0_i32_0 = arith.constant 0 : i32
    %c0_i32_1 = arith.constant 0 : i32
    return %arg0, %c1_i32, %c0_i32, %c0_i32_0 : i32, i32, i32, i32
  }
  func.func @transform_2(%arg0: i32) -> (i32, i32) {
    %c0_i32 = arith.constant 0 : i32
    %c0_i32_0 = arith.constant 0 : i32
    %c0_i32_1 = arith.constant 0 : i32
    return %c0_i32, %c0_i32_0 : i32, i32
  }
  func.func @transform_3(%arg0: i32) -> (i32, i32) {
    %c0_i32 = arith.constant 0 : i32
    %c0_i32_0 = arith.constant 0 : i32
    %c0_i32_1 = arith.constant 0 : i32
    return %c0_i32, %c0_i32_0 : i32, i32
  }
  func.func @transform_4(%arg0: i32) -> (i32, i32) {
    %c0_i32 = arith.constant 0 : i32
    %c0_i32_0 = arith.constant 0 : i32
    %c0_i32_1 = arith.constant 0 : i32
    return %c0_i32, %c0_i32_0 : i32, i32
  }
  func.func @transform_5(%arg0: i32) -> (i32, i32) {
    %c0_i32 = arith.constant 0 : i32
    %c0_i32_0 = arith.constant 0 : i32
    return %arg0, %c0_i32 : i32, i32
  }
}

</mosaic_0001>

<llo_original>
// kernel: patch_merging_forward.1
$region0: #{patch_merging_forward.1}
  #allocation0 [shape = 'u32[]', space=smem, size = 0x4, offset = 0x4, fixed_abs, tag = 'smem constant byte address 0x4 - core index']
  #allocation1 [shape = 'u32[144,128]{1,0:T(1,128)}', space=vmem, size = 0x12000, scoped, tag = 'internal scratch']
  %s0 = inlined_call_operand.vmem [shape: f32[16,2,8,128], index: 0, kind: input, shape index: {}, may-alias: {0,1}]
  %s1 = inlined_call_operand.vmem [shape: f32[16,2,8,128], index: 1, kind: input, shape index: {}, may-alias: {0,1}]
  %s2 = inlined_call_operand.vmem [shape: f32[128,128], index: 2, kind: input, shape index: {}]
  %s3 = inlined_call_operand.vmem [shape: f32[128,128], index: 3, kind: input, shape index: {}]
  %s4 = inlined_call_operand.vmem [shape: f32[2,128], index: 4, kind: input, shape index: {}]
  %s5 = inlined_call_operand.hbm [shape: f32[128,128], index: 5, kind: output, shape index: {}]
  %s6 = sld [smem:[#allocation0]]
  $region129: #{patch_merging_forward.1} parent=0
    _
  %s8 = ssub.s32 1, %s6
  %s9 = scalar_select 0, %s8, %s6
  $region1: #{patch_merging_forward.1} parent=0
    #allocation2 [shape = 'u8[65536]{0}', space=vmem, size = 0x10000, scoped, tag = 'input window, operand 0']
    #allocation3 [shape = 'u8[65536]{0}', space=vmem, size = 0x10000, scoped, tag = 'input window, operand 1']
    #allocation4 [shape = 'u8[65536]{0}', space=vmem, size = 0x10000, scoped, tag = 'output window, operand 0']
    #allocation5 [shape = 's32[2]{0}', space=sflag, size = 0x8, scoped, tag = 'scoped memory for patch_merging_forward.1']
    %10 = vsyncpa [#allocation5], 0
    %s11 = scalar_lea.sflag [#allocation5], 1
    %12 = vsyncpa %s11, 0
    loop: start=0, step=1, limit=4
    $region2: #{patch_merging_forward.1} parent=1 // loop_pre_header
      _
    $region3: #{patch_merging_forward.1} parent=1 // loop_header
      %s14 = sphi 0, %s18
      %p15 = scmp.ge.s32.totalorder %s14, 4
      %s24 = sphi 0, %s26
      %s27 = sphi 0, %s24
      %s28 = sphi 0, %s27
      %s44 = sphi 0, %s28
      %s50 = sphi 0, %s52
      %s53 = sphi 0, %s50
      %s54 = sphi 0, %s53
      %s70 = sphi 0, %s54
      %s74 = sphi 0, %s74
      %s76 = sphi 0, %s74
      %s77 = sphi 0, %s76
      %s91 = sphi 0, %s77
      %s95 = sphi 0, %s95
      %s97 = sphi 0, %s95
      %s98 = sphi 0, %s97
      %s112 = sphi 0, %s98
      %s116 = sphi 0, %s116
      %s118 = sphi 0, %s116
      %s119 = sphi 0, %s118
      %s133 = sphi 0, %s119
      %s139 = sphi 0, %s141
      %s142 = sphi 0, %s139
      %s143 = sphi 0, %s142
      %s159 = sphi 0, %s143
    $region4: #{patch_merging_forward.1} parent=1 // loop_header_branch
      %17 = sbr.rel (%p15) target = $region8
    $region5: #{patch_merging_forward.1} parent=1 // loop_body
      %s19 = ssub.s32 %s14, 1
      %s20 = ssub.s32 %s14, 2
      %s21 = sadd.s32 %s14, 1
      %s22 = ssub.s32 %s14, %s21
      %p23 = scmp.eq.s32.totalorder %s22, 0
      %s25 = sadd.s32 %s24, 1
      %s26 = scalar_select %p23, %s24, %s25
      %p29 = pneg %p23
      %p30 = scmp.eq.s32.totalorder %s14, 1
      %p31 = por %p29, %p30
      %p32 = scmp.ne.s32.totalorder %s24, %s27
      %p33 = scmp.eq.s32.totalorder %s14, 0
      %p34 = por %p32, %p33
      %p35 = scmp.ne.s32.totalorder %s24, %s27
      %p36 = scmp.eq.s32.totalorder %s19, 1
      %p37 = por %p35, %p36
      %p38 = scmp.ne.s32.totalorder %s27, %s28
      %p39 = scmp.eq.s32.totalorder %s19, 0
      %p40 = por %p38, %p39
      %p41 = scmp.ne.s32.totalorder %s27, %s28
      %p42 = scmp.eq.s32.totalorder %s20, 1
      %p43 = por %p41, %p42
      %p45 = scmp.ne.s32.totalorder %s28, %s44
      %p46 = scmp.eq.s32.totalorder %s20, 0
      %p47 = por %p45, %p46
      %s48 = ssub.s32 %s14, %s21
      %p49 = scmp.eq.s32.totalorder %s48, 0
      %s51 = sadd.s32 %s50, 1
      %s52 = scalar_select %p49, %s50, %s51
      %p55 = pneg %p49
      %p56 = scmp.eq.s32.totalorder %s14, 1
      %p57 = por %p55, %p56
      %p58 = scmp.ne.s32.totalorder %s50, %s53
      %p59 = scmp.eq.s32.totalorder %s14, 0
      %p60 = por %p58, %p59
      %p61 = scmp.ne.s32.totalorder %s50, %s53
      %p62 = scmp.eq.s32.totalorder %s19, 1
      %p63 = por %p61, %p62
      %p64 = scmp.ne.s32.totalorder %s53, %s54
      %p65 = scmp.eq.s32.totalorder %s19, 0
      %p66 = por %p64, %p65
      %p67 = scmp.ne.s32.totalorder %s53, %s54
      %p68 = scmp.eq.s32.totalorder %s20, 1
      %p69 = por %p67, %p68
      %p71 = scmp.ne.s32.totalorder %s54, %s70
      %p72 = scmp.eq.s32.totalorder %s20, 0
      %p73 = por %p71, %p72
      %s75 = sadd.s32 %s74, 1
      %p78 = scmp.eq.s32.totalorder %s14, 1
      %p79 = scmp.ne.s32.totalorder %s74, %s76
      %p80 = scmp.eq.s32.totalorder %s14, 0
      %p81 = por %p79, %p80
      %p82 = scmp.ne.s32.totalorder %s74, %s76
      %p83 = scmp.eq.s32.totalorder %s19, 1
      %p84 = por %p82, %p83
      %p85 = scmp.ne.s32.totalorder %s76, %s77
      %p86 = scmp.eq.s32.totalorder %s19, 0
      %p87 = por %p85, %p86
      %p88 = scmp.ne.s32.totalorder %s76, %s77
      %p89 = scmp.eq.s32.totalorder %s20, 1
      %p90 = por %p88, %p89
      %p92 = scmp.ne.s32.totalorder %s77, %s91
      %p93 = scmp.eq.s32.totalorder %s20, 0
      %p94 = por %p92, %p93
      %s96 = sadd.s32 %s95, 1
      %p99 = scmp.eq.s32.totalorder %s14, 1
      %p100 = scmp.ne.s32.totalorder %s95, %s97
      %p101 = scmp.eq.s32.totalorder %s14, 0
      %p102 = por %p100, %p101
      %p103 = scmp.ne.s32.totalorder %s95, %s97
      %p104 = scmp.eq.s32.totalorder %s19, 1
      %p105 = por %p103, %p104
      %p106 = scmp.ne.s32.totalorder %s97, %s98
      %p107 = scmp.eq.s32.totalorder %s19, 0
      %p108 = por %p106, %p107
      %p109 = scmp.ne.s32.totalorder %s97, %s98
      %p110 = scmp.eq.s32.totalorder %s20, 1
      %p111 = por %p109, %p110
      %p113 = scmp.ne.s32.totalorder %s98, %s112
      %p114 = scmp.eq.s32.totalorder %s20, 0
      %p115 = por %p113, %p114
      %s117 = sadd.s32 %s116, 1
      %p120 = scmp.eq.s32.totalorder %s14, 1
      %p121 = scmp.ne.s32.totalorder %s116, %s118
      %p122 = scmp.eq.s32.totalorder %s14, 0
      %p123 = por %p121, %p122
      %p124 = scmp.ne.s32.totalorder %s116, %s118
      %p125 = scmp.eq.s32.totalorder %s19, 1
      %p126 = por %p124, %p125
      %p127 = scmp.ne.s32.totalorder %s118, %s119
      %p128 = scmp.eq.s32.totalorder %s19, 0
      %p129 = por %p127, %p128
      %p130 = scmp.ne.s32.totalorder %s118, %s119
      %p131 = scmp.eq.s32.totalorder %s20, 1
      %p132 = por %p130, %p131
      %p134 = scmp.ne.s32.totalorder %s119, %s133
      %p135 = scmp.eq.s32.totalorder %s20, 0
      %p136 = por %p134, %p135
      %s137 = ssub.s32 %s14, %s21
      %p138 = scmp.eq.s32.totalorder %s137, 0
      %s140 = sadd.s32 %s139, 1
      %s141 = scalar_select %p138, %s139, %s140
      %p144 = pneg %p138
      %p145 = scmp.eq.s32.totalorder %s14, 1
      %p146 = por %p144, %p145
      %p147 = scmp.ne.s32.totalorder %s139, %s142
      %p148 = scmp.eq.s32.totalorder %s14, 0
      %p149 = por %p147, %p148
      %p150 = scmp.ne.s32.totalorder %s139, %s142
      %p151 = scmp.eq.s32.totalorder %s19, 1
      %p152 = por %p150, %p151
      %p153 = scmp.ne.s32.totalorder %s142, %s143
      %p154 = scmp.eq.s32.totalorder %s19, 0
      %p155 = por %p153, %p154
      %p156 = scmp.ne.s32.totalorder %s142, %s143
      %p157 = scmp.eq.s32.totalorder %s20, 1
      %p158 = por %p156, %p157
      %p160 = scmp.ne.s32.totalorder %s143, %s159
      %p161 = scmp.eq.s32.totalorder %s20, 0
      %p162 = por %p160, %p161
      %p163 = scmp.le.s32.totalorder 1, %s14
      %p164 = scmp.lt.s32.totalorder %s14, 3
      %p165 = pnand %p163, %p164
      %p166 = pneg %p165
      // Predicated region
      $region9: #{patch_merging_forward.1} parent=5 // pred_check
        _
      $region10: #{patch_merging_forward.1} parent=5 // pred_check_branch
        %168 = sbr.rel (%p165) target = $region12
      $region11: #{patch_merging_forward.1} parent=5 // pred_region
        %s169 = ssub.s32 %s14, 1
        // Predicated region
        $region13: #{patch_merging_forward.1} parent=11 // pred_check
          %p170 = pneg %p87
        $region14: #{patch_merging_forward.1} parent=11 // pred_check_branch
          %172 = sbr.rel (%p170) target = $region16
        $region15: #{patch_merging_forward.1} parent=11 // pred_region
          _
        $region16: #{patch_merging_forward.1} parent=11 // pred_fallthru
          _
        // Predicated region
        $region17: #{patch_merging_forward.1} parent=11 // pred_check
          %p173 = pneg %p108
        $region18: #{patch_merging_forward.1} parent=11 // pred_check_branch
          %175 = sbr.rel (%p173) target = $region20
        $region19: #{patch_merging_forward.1} parent=11 // pred_region
          _
        $region20: #{patch_merging_forward.1} parent=11 // pred_fallthru
          _
        // Predicated region
        $region21: #{patch_merging_forward.1} parent=11 // pred_check
          %p176 = pneg %p129
        $region22: #{patch_merging_forward.1} parent=11 // pred_check_branch
          %178 = sbr.rel (%p176) target = $region24
        $region23: #{patch_merging_forward.1} parent=11 // pred_region
          _
        $region24: #{patch_merging_forward.1} parent=11 // pred_fallthru
          _
      $region12: #{patch_merging_forward.1} parent=5 // pred_fallthru
        _
      %p179 = scmp.lt.s32.totalorder %s14, 2
      // Predicated region
      $region25: #{patch_merging_forward.1} parent=5 // pred_check
        %p180 = pneg %p179
      $region26: #{patch_merging_forward.1} parent=5 // pred_check_branch
        %182 = sbr.rel (%p180) target = $region28
      $region27: #{patch_merging_forward.1} parent=5 // pred_region
        // Predicated region
        $region29: #{patch_merging_forward.1} parent=27 // pred_check
          %p183 = pneg %p34
        $region30: #{patch_merging_forward.1} parent=27 // pred_check_branch
          %185 = sbr.rel (%p183) target = $region32
        $region31: #{patch_merging_forward.1} parent=27 // pred_region
          %s186 = sand.u32 %s24, 1
          %s187 = sand.u32 %s24, 1
          %s188 = smul.addr %s187, 64
          %s189 = scalar_lea.vmem [#allocation2], %s188
          %s190 = smul.u32 8, %s14
          %s191 = smul.addr %s190, 2
          %s192 = smul.addr %s191, 8
          %s193 = scalar_lea.vmem %s0, %s192
          // Predicated region
          $region33: #{patch_merging_forward.1} parent=31 // pred_check
            _
          $region34: #{patch_merging_forward.1} parent=31 // pred_check_branch
            %195 = sbr.rel (0) target = $region36
          $region35: #{patch_merging_forward.1} parent=31 // pred_region
            // Predicated region
            $region37: #{patch_merging_forward.1} parent=35 // pred_check
              _
            $region38: #{patch_merging_forward.1} parent=35 // pred_check_branch
              %197 = sbr.rel (0) target = $region40
            $region39: #{patch_merging_forward.1} parent=35 // pred_region
              // Predicated region
              $region52: #{patch_merging_forward.1} parent=39 // pred_check
                _
              $region53: #{patch_merging_forward.1} parent=39 // pred_check_branch
                %226 = sbr.rel (0) target = $region55
              $region54: #{patch_merging_forward.1} parent=39 // pred_region
                loop: start=0, step=1, limit=1
                $region56: #{patch_merging_forward.1} parent=54 // loop_pre_header
                  _
                $region57: #{patch_merging_forward.1} parent=54 // loop_header
                  %s228 = sphi 0, %s232
                  %p229 = scmp.ge.s32.totalorder %s228, 1
                  %s233 = sphi %s193, %s193
                  %s234 = sphi %s189, %s189
                $region58: #{patch_merging_forward.1} parent=54 // loop_header_branch
                  %231 = sbr.rel (%p229) target = $region62
                $region59: #{patch_merging_forward.1} parent=54 // loop_body
                  %v235 = vld [vmem:[%s233] sm:$0xff]
                  %236 = vst [vmem:[%s234] sm:$0xff] %v235
                  %v237 = vld [vmem:[%s233 + $0x10] sm:$0xff]
                  %238 = vst [vmem:[%s234 + $0x8] sm:$0xff] %v237
                  %v239 = vld [vmem:[%s233 + $0x20] sm:$0xff]
                  %240 = vst [vmem:[%s234 + $0x10] sm:$0xff] %v239
                  %v241 = vld [vmem:[%s233 + $0x30] sm:$0xff]
                  %242 = vst [vmem:[%s234 + $0x18] sm:$0xff] %v241
                  %v243 = vld [vmem:[%s233 + $0x40] sm:$0xff]
                  %244 = vst [vmem:[%s234 + $0x20] sm:$0xff] %v243
                  %v245 = vld [vmem:[%s233 + $0x50] sm:$0xff]
                  %246 = vst [vmem:[%s234 + $0x28] sm:$0xff] %v245
                  %v247 = vld [vmem:[%s233 + $0x60] sm:$0xff]
                  %248 = vst [vmem:[%s234 + $0x30] sm:$0xff] %v247
                  %v249 = vld [vmem:[%s233 + $0x70] sm:$0xff]
                  %250 = vst [vmem:[%s234 + $0x38] sm:$0xff] %v249
                $region60: #{patch_merging_forward.1} parent=54 // loop_footer
                  %s232 = sadd.s32 1, %s228
                $region61: #{patch_merging_forward.1} parent=54 // loop_footer_branch
                  %227 = sbr.rel target = $region57
                $region62: #{patch_merging_forward.1} parent=54 // loop_exit
                  _
              $region55: #{patch_merging_forward.1} parent=39 // pred_fallthru
                _
              // Predicated region
              $region63: #{patch_merging_forward.1} parent=39 // pred_check
                _
              $region64: #{patch_merging_forward.1} parent=39 // pred_check_branch
                %252 = sbr.rel target = $region66
              $region65: #{patch_merging_forward.1} parent=39 // pred_region
                _
              $region66: #{patch_merging_forward.1} parent=39 // pred_fallthru
                _
            $region40: #{patch_merging_forward.1} parent=35 // pred_fallthru
              _
            // Predicated region
            $region41: #{patch_merging_forward.1} parent=35 // pred_check
              _
            $region42: #{patch_merging_forward.1} parent=35 // pred_check_branch
              %199 = sbr.rel target = $region44
            $region43: #{patch_merging_forward.1} parent=35 // pred_region
              loop: start=0, step=1, limit=1
              $region45: #{patch_merging_forward.1} parent=43 // loop_pre_header
                _
              $region46: #{patch_merging_forward.1} parent=43 // loop_header
                %s202 = sphi 0, %s206
                %p203 = scmp.ge.s32.totalorder %s202, 1
                %s207 = sphi %s193, %s193
                %s208 = sphi %s189, %s189
              $region47: #{patch_merging_forward.1} parent=43 // loop_header_branch
                %205 = sbr.rel (%p203) target = $region51
              $region48: #{patch_merging_forward.1} parent=43 // loop_body
                %v209 = vld [vmem:[%s207] sm:$0xff]
                %210 = vst [vmem:[%s208] sm:$0xff] %v209
                %v211 = vld [vmem:[%s207 + $0x10] sm:$0xff]
                %212 = vst [vmem:[%s208 + $0x8] sm:$0xff] %v211
                %v213 = vld [vmem:[%s207 + $0x20] sm:$0xff]
                %214 = vst [vmem:[%s208 + $0x10] sm:$0xff] %v213
                %v215 = vld [vmem:[%s207 + $0x30] sm:$0xff]
                %216 = vst [vmem:[%s208 + $0x18] sm:$0xff] %v215
                %v217 = vld [vmem:[%s207 + $0x40] sm:$0xff]
                %218 = vst [vmem:[%s208 + $0x20] sm:$0xff] %v217
                %v219 = vld [vmem:[%s207 + $0x50] sm:$0xff]
                %220 = vst [vmem:[%s208 + $0x28] sm:$0xff] %v219
                %v221 = vld [vmem:[%s207 + $0x60] sm:$0xff]
                %222 = vst [vmem:[%s208 + $0x30] sm:$0xff] %v221
                %v223 = vld [vmem:[%s207 + $0x70] sm:$0xff]
                %224 = vst [vmem:[%s208 + $0x38] sm:$0xff] %v223
              $region49: #{patch_merging_forward.1} parent=43 // loop_footer
                %s206 = sadd.s32 1, %s202
              $region50: #{patch_merging_forward.1} parent=43 // loop_footer_branch
                %201 = sbr.rel target = $region46
              $region51: #{patch_merging_forward.1} parent=43 // loop_exit
                _
            $region44: #{patch_merging_forward.1} parent=35 // pred_fallthru
              _
          $region36: #{patch_merging_forward.1} parent=31 // pred_fallthru
            _
          %253 = vnop
        $region32: #{patch_merging_forward.1} parent=27 // pred_fallthru
          _
        // Predicated region
        $region67: #{patch_merging_forward.1} parent=27 // pred_check
          %p254 = pneg %p60
        $region68: #{patch_merging_forward.1} parent=27 // pred_check_branch
          %256 = sbr.rel (%p254) target = $region70
        $region69: #{patch_merging_forward.1} parent=27 // pred_region
          %s257 = sand.u32 %s50, 1
          %s258 = sand.u32 %s50, 1
          %s259 = smul.addr %s258, 64
          %s260 = scalar_lea.vmem [#allocation3], %s259
          %s261 = smul.u32 8, %s14
          %s262 = smul.addr %s261, 2
          %s263 = sadd.s32 1, %s262
          %s264 = smul.addr %s263, 8
          %s265 = scalar_lea.vmem %s1, %s264
          // Predicated region
          $region71: #{patch_merging_forward.1} parent=69 // pred_check
            _
          $region72: #{patch_merging_forward.1} parent=69 // pred_check_branch
            %267 = sbr.rel (0) target = $region74
          $region73: #{patch_merging_forward.1} parent=69 // pred_region
            // Predicated region
            $region75: #{patch_merging_forward.1} parent=73 // pred_check
              _
            $region76: #{patch_merging_forward.1} parent=73 // pred_check_branch
              %269 = sbr.rel (0) target = $region78
            $region77: #{patch_merging_forward.1} parent=73 // pred_region
              // Predicated region
              $region90: #{patch_merging_forward.1} parent=77 // pred_check
                _
              $region91: #{patch_merging_forward.1} parent=77 // pred_check_branch
                %298 = sbr.rel (0) target = $region93
              $region92: #{patch_merging_forward.1} parent=77 // pred_region
                loop: start=0, step=1, limit=1
                $region94: #{patch_merging_forward.1} parent=92 // loop_pre_header
                  _
                $region95: #{patch_merging_forward.1} parent=92 // loop_header
                  %s300 = sphi 0, %s304
                  %p301 = scmp.ge.s32.totalorder %s300, 1
                  %s305 = sphi %s265, %s265
                  %s306 = sphi %s260, %s260
                $region96: #{patch_merging_forward.1} parent=92 // loop_header_branch
                  %303 = sbr.rel (%p301) target = $region100
                $region97: #{patch_merging_forward.1} parent=92 // loop_body
                  %v307 = vld [vmem:[%s305] sm:$0xff]
                  %308 = vst [vmem:[%s306] sm:$0xff] %v307
                  %v309 = vld [vmem:[%s305 + $0x10] sm:$0xff]
                  %310 = vst [vmem:[%s306 + $0x8] sm:$0xff] %v309
                  %v311 = vld [vmem:[%s305 + $0x20] sm:$0xff]
                  %312 = vst [vmem:[%s306 + $0x10] sm:$0xff] %v311
                  %v313 = vld [vmem:[%s305 + $0x30] sm:$0xff]
                  %314 = vst [vmem:[%s306 + $0x18] sm:$0xff] %v313
                  %v315 = vld [vmem:[%s305 + $0x40] sm:$0xff]
                  %316 = vst [vmem:[%s306 + $0x20] sm:$0xff] %v315
                  %v317 = vld [vmem:[%s305 + $0x50] sm:$0xff]
                  %318 = vst [vmem:[%s306 + $0x28] sm:$0xff] %v317
                  %v319 = vld [vmem:[%s305 + $0x60] sm:$0xff]
                  %320 = vst [vmem:[%s306 + $0x30] sm:$0xff] %v319
                  %v321 = vld [vmem:[%s305 + $0x70] sm:$0xff]
                  %322 = vst [vmem:[%s306 + $0x38] sm:$0xff] %v321
                $region98: #{patch_merging_forward.1} parent=92 // loop_footer
                  %s304 = sadd.s32 1, %s300
                $region99: #{patch_merging_forward.1} parent=92 // loop_footer_branch
                  %299 = sbr.rel target = $region95
                $region100: #{patch_merging_forward.1} parent=92 // loop_exit
                  _
              $region93: #{patch_merging_forward.1} parent=77 // pred_fallthru
                _
              // Predicated region
              $region101: #{patch_merging_forward.1} parent=77 // pred_check
                _
              $region102: #{patch_merging_forward.1} parent=77 // pred_check_branch
                %324 = sbr.rel target = $region104
              $region103: #{patch_merging_forward.1} parent=77 // pred_region
                _
              $region104: #{patch_merging_forward.1} parent=77 // pred_fallthru
                _
            $region78: #{patch_merging_forward.1} parent=73 // pred_fallthru
              _
            // Predicated region
            $region79: #{patch_merging_forward.1} parent=73 // pred_check
              _
            $region80: #{patch_merging_forward.1} parent=73 // pred_check_branch
              %271 = sbr.rel target = $region82
            $region81: #{patch_merging_forward.1} parent=73 // pred_region
              loop: start=0, step=1, limit=1
              $region83: #{patch_merging_forward.1} parent=81 // loop_pre_header
                _
              $region84: #{patch_merging_forward.1} parent=81 // loop_header
                %s274 = sphi 0, %s278
                %p275 = scmp.ge.s32.totalorder %s274, 1
                %s279 = sphi %s265, %s265
                %s280 = sphi %s260, %s260
              $region85: #{patch_merging_forward.1} parent=81 // loop_header_branch
                %277 = sbr.rel (%p275) target = $region89
              $region86: #{patch_merging_forward.1} parent=81 // loop_body
                %v281 = vld [vmem:[%s279] sm:$0xff]
                %282 = vst [vmem:[%s280] sm:$0xff] %v281
                %v283 = vld [vmem:[%s279 + $0x10] sm:$0xff]
                %284 = vst [vmem:[%s280 + $0x8] sm:$0xff] %v283
                %v285 = vld [vmem:[%s279 + $0x20] sm:$0xff]
                %286 = vst [vmem:[%s280 + $0x10] sm:$0xff] %v285
                %v287 = vld [vmem:[%s279 + $0x30] sm:$0xff]
                %288 = vst [vmem:[%s280 + $0x18] sm:$0xff] %v287
                %v289 = vld [vmem:[%s279 + $0x40] sm:$0xff]
                %290 = vst [vmem:[%s280 + $0x20] sm:$0xff] %v289
                %v291 = vld [vmem:[%s279 + $0x50] sm:$0xff]
                %292 = vst [vmem:[%s280 + $0x28] sm:$0xff] %v291
                %v293 = vld [vmem:[%s279 + $0x60] sm:$0xff]
                %294 = vst [vmem:[%s280 + $0x30] sm:$0xff] %v293
                %v295 = vld [vmem:[%s279 + $0x70] sm:$0xff]
                %296 = vst [vmem:[%s280 + $0x38] sm:$0xff] %v295
              $region87: #{patch_merging_forward.1} parent=81 // loop_footer
                %s278 = sadd.s32 1, %s274
              $region88: #{patch_merging_forward.1} parent=81 // loop_footer_branch
                %273 = sbr.rel target = $region84
              $region89: #{patch_merging_forward.1} parent=81 // loop_exit
                _
            $region82: #{patch_merging_forward.1} parent=73 // pred_fallthru
              _
          $region74: #{patch_merging_forward.1} parent=69 // pred_fallthru
            _
          %325 = vnop
        $region70: #{patch_merging_forward.1} parent=27 // pred_fallthru
          _
      $region28: #{patch_merging_forward.1} parent=5 // pred_fallthru
        _
      %p326 = scmp.le.s32.totalorder 1, %s14
      %p327 = scmp.lt.s32.totalorder %s14, 3
      %p328 = pnand %p326, %p327
      %p329 = pneg %p328
      // Predicated region
      $region105: #{patch_merging_forward.1} parent=5 // pred_check
        _
      $region106: #{patch_merging_forward.1} parent=5 // pred_check_branch
        %331 = sbr.rel (%p328) target = $region108
      $region107: #{patch_merging_forward.1} parent=5 // pred_region
        %s332 = ssub.s32 %s14, 1
        %s333 = sand.u32 %s27, 1
        %s334 = sand.u32 %s27, 1
        %s335 = smul.addr %s334, 64
        %s336 = scalar_lea.vmem [#allocation2], %s335
        // Predicated region
        $region109: #{patch_merging_forward.1} parent=107 // pred_check
          %p337 = pneg %p40
        $region110: #{patch_merging_forward.1} parent=107 // pred_check_branch
          %339 = sbr.rel (%p337) target = $region112
        $region111: #{patch_merging_forward.1} parent=107 // pred_region
          _
        $region112: #{patch_merging_forward.1} parent=107 // pred_fallthru
          _
        %s340 = sand.u32 %s53, 1
        %s341 = sand.u32 %s53, 1
        %s342 = smul.addr %s341, 64
        %s343 = scalar_lea.vmem [#allocation3], %s342
        // Predicated region
        $region113: #{patch_merging_forward.1} parent=107 // pred_check
          %p344 = pneg %p66
        $region114: #{patch_merging_forward.1} parent=107 // pred_check_branch
          %346 = sbr.rel (%p344) target = $region116
        $region115: #{patch_merging_forward.1} parent=107 // pred_region
          _
        $region116: #{patch_merging_forward.1} parent=107 // pred_fallthru
          _
        %s347 = sand.u32 %s27, 1
        %s348 = sand.u32 %s27, 1
        %s349 = smul.addr %s348, 64
        %s350 = scalar_lea.vmem [#allocation2], %s349
        %p351 = pneg %p40
        %p352 = pneg %p37
        %s353 = sand.u32 %s53, 1
        %s354 = sand.u32 %s53, 1
        %s355 = smul.addr %s354, 64
        %s356 = scalar_lea.vmem [#allocation3], %s355
        %p357 = pneg %p66
        %p358 = pneg %p63
        %p359 = pneg %p87
        %p360 = pneg %p84
        %p361 = pneg %p108
        %p362 = pneg %p105
        %p363 = pneg %p129
        %p364 = pneg %p126
        %p365 = pneg %p155
        %p366 = pneg %p152
        %s367 = sand.u32 %s142, 1
        %s368 = scalar_lea.sflag [#allocation5], %s367
        %s369 = sand.u32 %s142, 1
        %s370 = smul.addr %s369, 64
        %s371 = scalar_lea.vmem [#allocation4], %s370
        %s372 = smul.u32 8, %s19
        %s373 = smul.u32 8, %s19
        %s374 = smul.u32 8, %s19
        %v375 = vld [vmem:[%s336] sm:$0xff]
        %v376 = vld [vmem:[%s336 + $0x8] sm:$0xff]
        %v377 = vld [vmem:[%s336 + $0x10] sm:$0xff]
        %v378 = vld [vmem:[%s336 + $0x18] sm:$0xff]
        %v379 = vld [vmem:[%s336 + $0x20] sm:$0xff]
        %v380 = vld [vmem:[%s336 + $0x28] sm:$0xff]
        %v381 = vld [vmem:[%s336 + $0x30] sm:$0xff]
        %v382 = vld [vmem:[%s336 + $0x38] sm:$0xff]
        %v383 = vld [vmem:[%s343] sm:$0xff]
        %v384 = vld [vmem:[%s343 + $0x8] sm:$0xff]
        %v385 = vld [vmem:[%s343 + $0x10] sm:$0xff]
        %v386 = vld [vmem:[%s343 + $0x18] sm:$0xff]
        %v387 = vld [vmem:[%s343 + $0x20] sm:$0xff]
        %v388 = vld [vmem:[%s343 + $0x28] sm:$0xff]
        %v389 = vld [vmem:[%s343 + $0x30] sm:$0xff]
        %v390 = vld [vmem:[%s343 + $0x38] sm:$0xff]
        %v391 = vld [vmem:[%s2] sm:$0xff]
        %v392 = vld [vmem:[%s2 + $0x8] sm:$0xff]
        %v393 = vld [vmem:[%s2 + $0x10] sm:$0xff]
        %v394 = vld [vmem:[%s2 + $0x18] sm:$0xff]
        %v395 = vld [vmem:[%s2 + $0x20] sm:$0xff]
        %v396 = vld [vmem:[%s2 + $0x28] sm:$0xff]
        %v397 = vld [vmem:[%s2 + $0x30] sm:$0xff]
        %v398 = vld [vmem:[%s2 + $0x38] sm:$0xff]
        %v399 = vld [vmem:[%s2 + $0x40] sm:$0xff]
        %v400 = vld [vmem:[%s2 + $0x48] sm:$0xff]
        %v401 = vld [vmem:[%s2 + $0x50] sm:$0xff]
        %v402 = vld [vmem:[%s2 + $0x58] sm:$0xff]
        %v403 = vld [vmem:[%s2 + $0x60] sm:$0xff]
        %v404 = vld [vmem:[%s2 + $0x68] sm:$0xff]
        %v405 = vld [vmem:[%s2 + $0x70] sm:$0xff]
        %v406 = vld [vmem:[%s2 + $0x78] sm:$0xff]
        %v407 = vld [vmem:[%s3] sm:$0xff]
        %v408 = vld [vmem:[%s3 + $0x8] sm:$0xff]
        %v409 = vld [vmem:[%s3 + $0x10] sm:$0xff]
        %v410 = vld [vmem:[%s3 + $0x18] sm:$0xff]
        %v411 = vld [vmem:[%s3 + $0x20] sm:$0xff]
        %v412 = vld [vmem:[%s3 + $0x28] sm:$0xff]
        %v413 = vld [vmem:[%s3 + $0x30] sm:$0xff]
        %v414 = vld [vmem:[%s3 + $0x38] sm:$0xff]
        %v415 = vld [vmem:[%s3 + $0x40] sm:$0xff]
        %v416 = vld [vmem:[%s3 + $0x48] sm:$0xff]
        %v417 = vld [vmem:[%s3 + $0x50] sm:$0xff]
        %v418 = vld [vmem:[%s3 + $0x58] sm:$0xff]
        %v419 = vld [vmem:[%s3 + $0x60] sm:$0xff]
        %v420 = vld [vmem:[%s3 + $0x68] sm:$0xff]
        %v421 = vld [vmem:[%s3 + $0x70] sm:$0xff]
        %v422 = vld [vmem:[%s3 + $0x78] sm:$0xff]
        %423 = vmatprep.subr.mxu0 0.0
        %424 = vmatpush1.msra.mxu0 %v407
        %425 = vmatprep.subr.mxu0 0.0
        %426 = vmatpush1.msra.mxu0 %v408
        %427 = vmatprep.subr.mxu0 0.0
        %428 = vmatpush1.msra.mxu0 %v409
        %429 = vmatprep.subr.mxu0 0.0
        %430 = vmatpush1.msra.mxu0 %v410
        %431 = vmatprep.subr.mxu0 0.0
        %432 = vmatpush1.msra.mxu0 %v411
        %433 = vmatprep.subr.mxu0 0.0
        %434 = vmatpush1.msra.mxu0 %v412
        %435 = vmatprep.subr.mxu0 0.0
        %436 = vmatpush1.msra.mxu0 %v413
        %437 = vmatprep.subr.mxu0 0.0
        %438 = vmatpush1.msra.mxu0 %v414
        %439 = vmatprep.subr.mxu0 0.0
        %440 = vmatpush1.msra.mxu0 %v415
        %441 = vmatprep.subr.mxu0 0.0
        %442 = vmatpush1.msra.mxu0 %v416
        %443 = vmatprep.subr.mxu0 0.0
        %444 = vmatpush1.msra.mxu0 %v417
        %445 = vmatprep.subr.mxu0 0.0
        %446 = vmatpush1.msra.mxu0 %v418
        %447 = vmatprep.subr.mxu0 0.0
        %448 = vmatpush1.msra.mxu0 %v419
        %449 = vmatprep.subr.mxu0 0.0
        %450 = vmatpush1.msra.mxu0 %v420
        %451 = vmatprep.subr.mxu0 0.0
        %452 = vmatpush1.msra.mxu0 %v421
        %453 = vmatprep.subr.mxu0 0.0
        %454 = vmatpush1.msra.mxu0 %v422
        %455 = vmatprep.subr.mxu0 0.0
        %456 = vmatpush1.msra.mxu0 0.0
        %457 = vmatprep.subr.mxu0 0.0
        %458 = vmatpush1.msra.mxu0 0.0
        %459 = vmatprep.subr.mxu0 0.0
        %460 = vmatpush1.msra.mxu0 0.0
        %461 = vmatprep.subr.mxu0 0.0
        %462 = vmatpush1.msra.mxu0 0.0
        %463 = vmatprep.subr.mxu0 0.0
        %464 = vmatpush1.msra.mxu0 0.0
        %465 = vmatprep.subr.mxu0 0.0
        %466 = vmatpush1.msra.mxu0 0.0
        %467 = vmatprep.subr.mxu0 0.0
        %468 = vmatpush1.msra.mxu0 0.0
        %469 = vmatprep.subr.mxu0 0.0
        %470 = vmatpush1.msra.mxu0 0.0
        %471 = vmatprep.subr.mxu0 0.0
        %472 = vmatpush1.msra.mxu0 0.0
        %473 = vmatprep.subr.mxu0 0.0
        %474 = vmatpush1.msra.mxu0 0.0
        %475 = vmatprep.subr.mxu0 0.0
        %476 = vmatpush1.msra.mxu0 0.0
        %477 = vmatprep.subr.mxu0 0.0
        %478 = vmatpush1.msra.mxu0 0.0
        %479 = vmatprep.subr.mxu0 0.0
        %480 = vmatpush1.msra.mxu0 0.0
        %481 = vmatprep.subr.mxu0 0.0
        %482 = vmatpush1.msra.mxu0 0.0
        %483 = vmatprep.subr.mxu0 0.0
        %484 = vmatpush1.msra.mxu0 0.0
        %485 = vmatprep.subr.mxu0 0.0
        %486 = vmatpush1.msra.mxu0 0.0
        %487 = vmatprep.mubr.f32.mxu0 0.0
        %488 = vmatmul.mubr.f32.gmra.mrb[0].mxu0 %v383
        %v489 = vpop.f32.mrb[0].mxu0
        %v490 = vadd.f32 0.0, %v489
        %v491 = vpop.f32.mrb[0].mxu0
        %492 = vmatprep.mubr.f32.mxu0 0.0
        %493 = vmatmul.mubr.f32.gmra.mrb[0].mxu0 %v384
        %v494 = vpop.f32.mrb[0].mxu0
        %v495 = vadd.f32 0.0, %v494
        %v496 = vpop.f32.mrb[0].mxu0
        %497 = vmatprep.mubr.f32.mxu0 0.0
        %498 = vmatmul.mubr.f32.gmra.mrb[0].mxu0 %v385
        %v499 = vpop.f32.mrb[0].mxu0
        %v500 = vadd.f32 0.0, %v499
        %v501 = vpop.f32.mrb[0].mxu0
        %502 = vmatprep.mubr.f32.mxu0 0.0
        %503 = vmatmul.mubr.f32.gmra.mrb[0].mxu0 %v386
        %v504 = vpop.f32.mrb[0].mxu0
        %v505 = vadd.f32 0.0, %v504
        %v506 = vpop.f32.mrb[0].mxu0
        %507 = vmatprep.mubr.f32.mxu0 0.0
        %508 = vmatmul.mubr.f32.gmra.mrb[0].mxu0 %v387
        %v509 = vpop.f32.mrb[0].mxu0
        %v510 = vadd.f32 0.0, %v509
        %v511 = vpop.f32.mrb[0].mxu0
        %512 = vmatprep.mubr.f32.mxu0 0.0
        %513 = vmatmul.mubr.f32.gmra.mrb[0].mxu0 %v388
        %v514 = vpop.f32.mrb[0].mxu0
        %v515 = vadd.f32 0.0, %v514
        %v516 = vpop.f32.mrb[0].mxu0
        %517 = vmatprep.mubr.f32.mxu0 0.0
        %518 = vmatmul.mubr.f32.gmra.mrb[0].mxu0 %v389
        %v519 = vpop.f32.mrb[0].mxu0
        %v520 = vadd.f32 0.0, %v519
        %v521 = vpop.f32.mrb[0].mxu0
        %522 = vmatprep.mubr.f32.mxu0 0.0
        %523 = vmatmul.mubr.f32.gmra.mrb[0].mxu0 %v390
        %v524 = vpop.f32.mrb[0].mxu0
        %v525 = vadd.f32 0.0, %v524
        %v526 = vpop.f32.mrb[0].mxu0
        %527 = vdwg.mxu0
        %528 = vmatprep.subr.mxu0 0.0
        %529 = vmatpush1.msra.mxu0 %v391
        %530 = vmatprep.subr.mxu0 0.0
        %531 = vmatpush1.msra.mxu0 %v392
        %532 = vmatprep.subr.mxu0 0.0
        %533 = vmatpush1.msra.mxu0 %v393
        %534 = vmatprep.subr.mxu0 0.0
        %535 = vmatpush1.msra.mxu0 %v394
        %536 = vmatprep.subr.mxu0 0.0
        %537 = vmatpush1.msra.mxu0 %v395
        %538 = vmatprep.subr.mxu0 0.0
        %539 = vmatpush1.msra.mxu0 %v396
        %540 = vmatprep.subr.mxu0 0.0
        %541 = vmatpush1.msra.mxu0 %v397
        %542 = vmatprep.subr.mxu0 0.0
        %543 = vmatpush1.msra.mxu0 %v398
        %544 = vmatprep.subr.mxu0 0.0
        %545 = vmatpush1.msra.mxu0 %v399
        %546 = vmatprep.subr.mxu0 0.0
        %547 = vmatpush1.msra.mxu0 %v400
        %548 = vmatprep.subr.mxu0 0.0
        %549 = vmatpush1.msra.mxu0 %v401
        %550 = vmatprep.subr.mxu0 0.0
        %551 = vmatpush1.msra.mxu0 %v402
        %552 = vmatprep.subr.mxu0 0.0
        %553 = vmatpush1.msra.mxu0 %v403
        %554 = vmatprep.subr.mxu0 0.0
        %555 = vmatpush1.msra.mxu0 %v404
        %556 = vmatprep.subr.mxu0 0.0
        %557 = vmatpush1.msra.mxu0 %v405
        %558 = vmatprep.subr.mxu0 0.0
        %559 = vmatpush1.msra.mxu0 %v406
        %560 = vmatprep.subr.mxu0 0.0
        %561 = vmatpush1.msra.mxu0 0.0
        %562 = vmatprep.subr.mxu0 0.0
        %563 = vmatpush1.msra.mxu0 0.0
        %564 = vmatprep.subr.mxu0 0.0
        %565 = vmatpush1.msra.mxu0 0.0
        %566 = vmatprep.subr.mxu0 0.0
        %567 = vmatpush1.msra.mxu0 0.0
        %568 = vmatprep.subr.mxu0 0.0
        %569 = vmatpush1.msra.mxu0 0.0
        %570 = vmatprep.subr.mxu0 0.0
        %571 = vmatpush1.msra.mxu0 0.0
        %572 = vmatprep.subr.mxu0 0.0
        %573 = vmatpush1.msra.mxu0 0.0
        %574 = vmatprep.subr.mxu0 0.0
        %575 = vmatpush1.msra.mxu0 0.0
        %576 = vmatprep.subr.mxu0 0.0
        %577 = vmatpush1.msra.mxu0 0.0
        %578 = vmatprep.subr.mxu0 0.0
        %579 = vmatpush1.msra.mxu0 0.0
        %580 = vmatprep.subr.mxu0 0.0
        %581 = vmatpush1.msra.mxu0 0.0
        %582 = vmatprep.subr.mxu0 0.0
        %583 = vmatpush1.msra.mxu0 0.0
        %584 = vmatprep.subr.mxu0 0.0
        %585 = vmatpush1.msra.mxu0 0.0
        %586 = vmatprep.subr.mxu0 0.0
        %587 = vmatpush1.msra.mxu0 0.0
        %588 = vmatprep.subr.mxu0 0.0
        %589 = vmatpush1.msra.mxu0 0.0
        %590 = vmatprep.subr.mxu0 0.0
        %591 = vmatpush1.msra.mxu0 0.0
        %592 = vmatprep.mubr.f32.mxu0 0.0
        %593 = vmatmul.mubr.f32.gmra.mrb[0].mxu0 %v375
        %v594 = vpop.f32.mrb[0].mxu0
        %v595 = vadd.f32 %v490, %v594
        %v596 = vpop.f32.mrb[0].mxu0
        %597 = vmatprep.mubr.f32.mxu0 0.0
        %598 = vmatmul.mubr.f32.gmra.mrb[0].mxu0 %v376
        %v599 = vpop.f32.mrb[0].mxu0
        %v600 = vadd.f32 %v495, %v599
        %v601 = vpop.f32.mrb[0].mxu0
        %602 = vmatprep.mubr.f32.mxu0 0.0
        %603 = vmatmul.mubr.f32.gmra.mrb[0].mxu0 %v377
        %v604 = vpop.f32.mrb[0].mxu0
        %v605 = vadd.f32 %v500, %v604
        %v606 = vpop.f32.mrb[0].mxu0
        %607 = vmatprep.mubr.f32.mxu0 0.0
        %608 = vmatmul.mubr.f32.gmra.mrb[0].mxu0 %v378
        %v609 = vpop.f32.mrb[0].mxu0
        %v610 = vadd.f32 %v505, %v609
        %v611 = vpop.f32.mrb[0].mxu0
        %612 = vmatprep.mubr.f32.mxu0 0.0
        %613 = vmatmul.mubr.f32.gmra.mrb[0].mxu0 %v379
        %v614 = vpop.f32.mrb[0].mxu0
        %v615 = vadd.f32 %v510, %v614
        %v616 = vpop.f32.mrb[0].mxu0
        %617 = vmatprep.mubr.f32.mxu0 0.0
        %618 = vmatmul.mubr.f32.gmra.mrb[0].mxu0 %v380
        %v619 = vpop.f32.mrb[0].mxu0
        %v620 = vadd.f32 %v515, %v619
        %v621 = vpop.f32.mrb[0].mxu0
        %622 = vmatprep.mubr.f32.mxu0 0.0
        %623 = vmatmul.mubr.f32.gmra.mrb[0].mxu0 %v381
        %v624 = vpop.f32.mrb[0].mxu0
        %v625 = vadd.f32 %v520, %v624
        %v626 = vpop.f32.mrb[0].mxu0
        %627 = vmatprep.mubr.f32.mxu0 0.0
        %628 = vmatmul.mubr.f32.gmra.mrb[0].mxu0 %v382
        %v629 = vpop.f32.mrb[0].mxu0
        %v630 = vadd.f32 %v525, %v629
        %v631 = vpop.f32.mrb[0].mxu0
        %632 = vdwg.mxu0
        %633 = vadd.xlane.f32.xlu0 %v595
        %v634 = vpop.xlane.xlu0 %633
        %635 = vadd.xlane.f32.xlu0 %v600
        %v636 = vpop.xlane.xlu0 %635
        %637 = vadd.xlane.f32.xlu0 %v605
        %v638 = vpop.xlane.xlu0 %637
        %639 = vadd.xlane.f32.xlu0 %v610
        %v640 = vpop.xlane.xlu0 %639
        %641 = vadd.xlane.f32.xlu0 %v615
        %v642 = vpop.xlane.xlu0 %641
        %643 = vadd.xlane.f32.xlu0 %v620
        %v644 = vpop.xlane.xlu0 %643
        %645 = vadd.xlane.f32.xlu0 %v625
        %v646 = vpop.xlane.xlu0 %645
        %647 = vadd.xlane.f32.xlu0 %v630
        %v648 = vpop.xlane.xlu0 %647
        %v649 = vmul.f32 %v634, 0.0078125
        %v650 = vmul.f32 %v636, 0.0078125
        %v651 = vmul.f32 %v638, 0.0078125
        %v652 = vmul.f32 %v640, 0.0078125
        %v653 = vmul.f32 %v642, 0.0078125
        %v654 = vmul.f32 %v644, 0.0078125
        %v655 = vmul.f32 %v646, 0.0078125
        %v656 = vmul.f32 %v648, 0.0078125
        %v657 = vmul.f32 %v595, %v595
        %v658 = vmul.f32 %v600, %v600
        %v659 = vmul.f32 %v605, %v605
        %v660 = vmul.f32 %v610, %v610
        %v661 = vmul.f32 %v615, %v615
        %v662 = vmul.f32 %v620, %v620
        %v663 = vmul.f32 %v625, %v625
        %v664 = vmul.f32 %v630, %v630
        %665 = vadd.xlane.f32.xlu0 %v657
        %v666 = vpop.xlane.xlu0 %665
        %667 = vadd.xlane.f32.xlu0 %v658
        %v668 = vpop.xlane.xlu0 %667
        %669 = vadd.xlane.f32.xlu0 %v659
        %v670 = vpop.xlane.xlu0 %669
        %671 = vadd.xlane.f32.xlu0 %v660
        %v672 = vpop.xlane.xlu0 %671
        %673 = vadd.xlane.f32.xlu0 %v661
        %v674 = vpop.xlane.xlu0 %673
        %675 = vadd.xlane.f32.xlu0 %v662
        %v676 = vpop.xlane.xlu0 %675
        %677 = vadd.xlane.f32.xlu0 %v663
        %v678 = vpop.xlane.xlu0 %677
        %679 = vadd.xlane.f32.xlu0 %v664
        %v680 = vpop.xlane.xlu0 %679
        %v681 = vmul.f32 %v666, 0.0078125
        %v682 = vmul.f32 %v668, 0.0078125
        %v683 = vmul.f32 %v670, 0.0078125
        %v684 = vmul.f32 %v672, 0.0078125
        %v685 = vmul.f32 %v674, 0.0078125
        %v686 = vmul.f32 %v676, 0.0078125
        %v687 = vmul.f32 %v678, 0.0078125
        %v688 = vmul.f32 %v680, 0.0078125
        %v689 = vmul.f32 %v649, %v649
        %v690 = vmul.f32 %v650, %v650
        %v691 = vmul.f32 %v651, %v651
        %v692 = vmul.f32 %v652, %v652
        %v693 = vmul.f32 %v653, %v653
        %v694 = vmul.f32 %v654, %v654
        %v695 = vmul.f32 %v655, %v655
        %v696 = vmul.f32 %v656, %v656
        %v697 = vsub.f32 %v681, %v689
        %v698 = vsub.f32 %v682, %v690
        %v699 = vsub.f32 %v683, %v691
        %v700 = vsub.f32 %v684, %v692
        %v701 = vsub.f32 %v685, %v693
        %v702 = vsub.f32 %v686, %v694
        %v703 = vsub.f32 %v687, %v695
        %v704 = vsub.f32 %v688, %v696
        %v705 = vmax.f32 %v697, 0.0
        %v706 = vmax.f32 %v698, 0.0
        %v707 = vmax.f32 %v699, 0.0
        %v708 = vmax.f32 %v700, 0.0
        %v709 = vmax.f32 %v701, 0.0
        %v710 = vmax.f32 %v702, 0.0
        %v711 = vmax.f32 %v703, 0.0
        %v712 = vmax.f32 %v704, 0.0
        %v713 = vsub.f32 %v595, %v649
        %v714 = vsub.f32 %v600, %v650
        %v715 = vsub.f32 %v605, %v651
        %v716 = vsub.f32 %v610, %v652
        %v717 = vsub.f32 %v615, %v653
        %v718 = vsub.f32 %v620, %v654
        %v719 = vsub.f32 %v625, %v655
        %v720 = vsub.f32 %v630, %v656
        %v721 = vadd.f32 %v705, 1e-05
        %v722 = vadd.f32 %v706, 1e-05
        %v723 = vadd.f32 %v707, 1e-05
        %v724 = vadd.f32 %v708, 1e-05
        %v725 = vadd.f32 %v709, 1e-05
        %v726 = vadd.f32 %v710, 1e-05
        %v727 = vadd.f32 %v711, 1e-05
        %v728 = vadd.f32 %v712, 1e-05
        %v729 = vrsqrt.pop %v721
        %v730 = vrsqrt.pop %v722
        %v731 = vrsqrt.pop %v723
        %v732 = vrsqrt.pop %v724
        %v733 = vrsqrt.pop %v725
        %v734 = vrsqrt.pop %v726
        %v735 = vrsqrt.pop %v727
        %v736 = vrsqrt.pop %v728
        %v737 = vmul.f32 %v713, %v729
        %v738 = vmul.f32 %v714, %v730
        %v739 = vmul.f32 %v715, %v731
        %v740 = vmul.f32 %v716, %v732
        %v741 = vmul.f32 %v717, %v733
        %v742 = vmul.f32 %v718, %v734
        %v743 = vmul.f32 %v719, %v735
        %v744 = vmul.f32 %v720, %v736
        %v745 = vld [vmem:[%s4] sm:$0x3]
        %v746 = vlaneseq
        %v747 = vshrl.u32 %v746, 7
        %v748 = vsub.s32 0, %v747
        %v749 = vrot.slane %v745, %v748
        %v750 = vmul.f32 %v737, %v749
        %v751 = vmul.f32 %v738, %v749
        %v752 = vmul.f32 %v739, %v749
        %v753 = vmul.f32 %v740, %v749
        %v754 = vmul.f32 %v741, %v749
        %v755 = vmul.f32 %v742, %v749
        %v756 = vmul.f32 %v743, %v749
        %v757 = vmul.f32 %v744, %v749
        %v758 = vlaneseq
        %v759 = vshrl.u32 %v758, 7
        %v760 = vsub.s32 1, %v759
        %v761 = vrot.slane %v745, %v760
        %v762 = vadd.f32 %v750, %v761
        %v763 = vadd.f32 %v751, %v761
        %v764 = vadd.f32 %v752, %v761
        %v765 = vadd.f32 %v753, %v761
        %v766 = vadd.f32 %v754, %v761
        %v767 = vadd.f32 %v755, %v761
        %v768 = vadd.f32 %v756, %v761
        %v769 = vadd.f32 %v757, %v761
        %770 = vst [vmem:[%s371] sm:$0xff] %v762
        %771 = vst [vmem:[%s371 + $0x8] sm:$0xff] %v763
        %772 = vst [vmem:[%s371 + $0x10] sm:$0xff] %v764
        %773 = vst [vmem:[%s371 + $0x18] sm:$0xff] %v765
        %774 = vst [vmem:[%s371 + $0x20] sm:$0xff] %v766
        %775 = vst [vmem:[%s371 + $0x28] sm:$0xff] %v767
        %776 = vst [vmem:[%s371 + $0x30] sm:$0xff] %v768
        %777 = vst [vmem:[%s371 + $0x38] sm:$0xff] %v769
        %s778 = sand.u32 %s142, 1
        %s779 = scalar_lea.sflag [#allocation5], %s778
        %s780 = sand.u32 %s142, 1
        %s781 = smul.addr %s780, 64
        %s782 = scalar_lea.vmem [#allocation4], %s781
        // Predicated region
        $region117: #{patch_merging_forward.1} parent=107 // pred_check
          %p783 = pneg %p152
        $region118: #{patch_merging_forward.1} parent=107 // pred_check_branch
          %785 = sbr.rel (%p783) target = $region120
        $region119: #{patch_merging_forward.1} parent=107 // pred_region
          %s786 = smul.u32 8, %s19
          %s788 = ssub.s32 1024, 1024
          %789 = vsyncadd %s779, %s788
          %s790 = smul.addr %s786, 128
          %s791 = scalar_lea.hbm %s5, %s790
          %s792 = sshll.u32 %s782, 4
          %s793 = int_to_ptr.vmem [resolvable:$true] %s792
          %798 = dma.vmem_to_hbm [thread:$0]  %s793, 1024, %s791, %s779, 128, 128, 8
        $region120: #{patch_merging_forward.1} parent=107 // pred_fallthru
          _
      $region108: #{patch_merging_forward.1} parent=5 // pred_fallthru
        _
      %p799 = scmp.le.s32.totalorder 2, %s14
      // Predicated region
      $region121: #{patch_merging_forward.1} parent=5 // pred_check
        %p800 = pneg %p799
      $region122: #{patch_merging_forward.1} parent=5 // pred_check_branch
        %802 = sbr.rel (%p800) target = $region124
      $region123: #{patch_merging_forward.1} parent=5 // pred_region
        %s803 = ssub.s32 %s14, 2
        // Predicated region
        $region125: #{patch_merging_forward.1} parent=123 // pred_check
          %p804 = pneg %p158
        $region126: #{patch_merging_forward.1} parent=123 // pred_check_branch
          %806 = sbr.rel (%p804) target = $region128
        $region127: #{patch_merging_forward.1} parent=123 // pred_region
          %s807 = sand.u32 %s143, 1
          %s808 = scalar_lea.sflag [#allocation5], %s807
          %s809 = sand.u32 %s143, 1
          %s810 = smul.addr %s809, 64
          %s811 = scalar_lea.vmem [#allocation4], %s810
          %812 = dma.done %s808, 1024
        $region128: #{patch_merging_forward.1} parent=123 // pred_fallthru
          _
      $region124: #{patch_merging_forward.1} parent=5 // pred_fallthru
        _
    $region6: #{patch_merging_forward.1} parent=1 // loop_footer
      %s18 = sadd.s32 1, %s14
    $region7: #{patch_merging_forward.1} parent=1 // loop_footer_branch
      %13 = sbr.rel target = $region3
    $region8: #{patch_merging_forward.1} parent=1 // loop_exit
      _
    %813 = vsyncpa [#allocation5], 1
    %s814 = scalar_lea.sflag [#allocation5], 1
    %815 = vsyncpa %s814, 1

</llo_original>
